<compile_context>
chip_gen: v7x
topology: tpu7x:2x2x1
jax: 0.10.0
libtpu: 0.0.40
codegen_flags: <defaults>
</compile_context>

<pallas_src>
import functools

import jax
import jax.numpy as jnp
from jax import lax
from jax.experimental import pallas as pl
from jax.experimental.pallas import tpu as pltpu


def _conv2d_kernel(x_ref, w_ref, b_ref, o_ref, *, N, Cin, H, KH, pad, WoCout):
    # x_ref : (N, Cin, H, W)        raw NCHW input (no pre-pad / pre-transpose)
    # w_ref : (KH, Cin*W, WoCout)   banded weights (kw taps + width padding +
    #                               Cout interleave folded in at init time)
    # b_ref : (1, WoCout)           bias pre-tiled to the lane-dense layout
    # o_ref : (N*Ho, WoCout)        lane-dense output (Ho == H, WoCout = Wo*Cout)
    rows = N * H

    # Build the LHS slab once: lane-concat the Cin planes (K = Cin*W) and
    # sublane-concat the batch (M = N*H).  Pure XLU/VPU work, hoisted above the
    # kh loop, so each kh tap below is a single MXU matmul.
    lhs = jnp.concatenate(
        [jnp.concatenate([x_ref[n, ci, :, :] for ci in range(Cin)], axis=-1)
         for n in range(N)],
        axis=0)                                               # (N*H, Cin*W)

    # Accumulator kept in vregs; bias folded into the init.
    acc = jnp.broadcast_to(b_ref[...], (rows, WoCout)).astype(jnp.float32)

    # Row index within one image (for the height zero-padding mask).
    row_in_img = lax.broadcasted_iota(jnp.int32, (rows, WoCout), 0) % H

    for kh in range(KH):                                      # unrolled, KH = 3
        dh = kh - pad                                         # input-row offset
        tap = jnp.dot(lhs, w_ref[kh], preferred_element_type=jnp.float32)
        if dh == 0:
            acc = acc + tap
        else:
            # Output row ho needs tap row ho + dh; do a full-tile sublane roll
            # (XLU slot) and mask rows that would have read the zero padding.
            # The mask also kills any cross-image wraparound of the roll.
            shifted = pltpu.roll(tap, shift=(-dh) % rows, axis=0)
            valid = (row_in_img + dh >= 0) & (row_in_img + dh < H)
            acc = acc + jnp.where(valid, shifted, 0.0)

    # One full lane-dense unmasked store.
    o_ref[...] = acc.astype(o_ref.dtype)


def _banded_weights(w_oihw, W, Wo, pad):
    """w_band[kh, ci*W + u, wo*Cout + co] = w[co, ci, kh, u - wo + pad].

    Entries whose kw index (u - wo + pad) falls outside [0, KW) are zero, which
    folds the width zero-padding into the weights, so the kernel never pads the
    input along W.
    """
    Cout, Cin, KH, KW = w_oihw.shape
    w_t = jnp.transpose(w_oihw, (2, 1, 3, 0))                 # (KH, Cin, KW, Cout)
    u = jnp.arange(W)[:, None]                                # input column
    wo = jnp.arange(Wo)[None, :]                              # output column
    kw_idx = u - wo + pad                                     # (W, Wo)
    valid = (kw_idx >= 0) & (kw_idx < KW)
    kw_c = jnp.clip(kw_idx, 0, KW - 1)
    band = jnp.take(w_t, kw_c, axis=2)                        # (KH, Cin, W, Wo, Cout)
    band = band * valid[None, None, :, :, None].astype(band.dtype)
    return band.reshape(KH, Cin * W, Wo * Cout)


def init_conv_params(w_oihw, bias, H, W, *, padding=1):
    """One-time parameter re-layout (hoisted out of the per-call hot path)."""
    Cout, Cin, KH, KW = w_oihw.shape
    Wo = W + 2 * padding - KW + 1
    w_band = _banded_weights(w_oihw, W, Wo, padding)          # (KH, Cin*W, Wo*Cout)
    b_tile = jnp.tile(bias, Wo).reshape(1, Wo * Cout)          # [0, wo*Cout+co] = b[co]
    return w_band, b_tile


@functools.partial(jax.jit, static_argnames=("Cout", "KH", "pad"))
def conv2d_pallas(x_nchw, w_band, b_tile, *, Cout, KH, pad):
    N, Cin, H, W = x_nchw.shape
    KH_w, K, WoCout = w_band.shape
    assert KH_w == KH and K == Cin * W
    Wo = WoCout // Cout
    Ho = H + 2 * pad - KH + 1
    # This kernel implements the shape-preserving (stride=1, "same") conv path
    # used by the test; the roll+mask height handling relies on Ho == H.
    assert Ho == H
    rows = N * Ho

    kernel = functools.partial(_conv2d_kernel, N=N, Cin=Cin, H=H, KH=KH,
                               pad=pad, WoCout=WoCout)

    flops = 2 * KH * rows * K * WoCout
    bytes_accessed = 4 * (x_nchw.size + w_band.size + b_tile.size + rows * WoCout)

    out_flat = pl.pallas_call(
        kernel,
        out_shape=jax.ShapeDtypeStruct((rows, WoCout), x_nchw.dtype),
        grid_spec=pltpu.PrefetchScalarGridSpec(
            num_scalar_prefetch=0,
            grid=(1,),                    # whole problem in one step: it all fits in a few vregs
            in_specs=[
                pl.BlockSpec((N, Cin, H, W), lambda i: (0, 0, 0, 0)),
                pl.BlockSpec((KH, K, WoCout), lambda i: (0, 0, 0)),
                pl.BlockSpec((1, WoCout), lambda i: (0, 0)),
            ],
            out_specs=pl.BlockSpec((rows, WoCout), lambda i: (0, 0)),
        ),
        compiler_params=pltpu.CompilerParams(
            dimension_semantics=("arbitrary",)),
        cost_estimate=pl.CostEstimate(flops=flops, transcendentals=0,
                                      bytes_accessed=bytes_accessed),
    )(x_nchw, w_band, b_tile)

    # Free contiguous reshape + the one tiny (16 KiB) transpose required by the
    # PyTorch NCHW output contract.
    # TODO(synk): fold this permutation into the kernel store if the standalone
    # transpose op ever shows up in profiles.
    return jnp.transpose(out_flat.reshape(N, Ho, Wo, Cout), (0, 3, 1, 2))


if __name__ == "__main__":
    key = jax.random.PRNGKey(0)
    k1, k2, k3 = jax.random.split(key, 3)

    N, Cin, H, W = 2, 4, 16, 16
    Cout, KH, KW = 8, 3, 3
    pad = 1

    x = jax.random.normal(k1, (N, Cin, H, W), dtype=jnp.float32)
    # Deterministic synthetic parameters (no checkpoint load).
    w = jax.random.normal(k2, (Cout, Cin, KH, KW), dtype=jnp.float32) * 0.1
    b = jax.random.normal(k3, (Cout,), dtype=jnp.float32) * 0.1

    # One-time weight/bias re-layout (kept out of the per-forward hot path).
    w_band, b_tile = init_conv_params(w, b, H, W, padding=pad)
    w_band = jax.block_until_ready(w_band)
    b_tile = jax.block_until_ready(b_tile)

    out = conv2d_pallas(x, w_band, b_tile, Cout=Cout, KH=KH, pad=pad)
    out = jax.block_until_ready(out)

    # Reference check against XLA conv (same semantics as F.conv2d, stride=1, pad=1).
    ref = lax.conv_general_dilated(
        x, w, window_strides=(1, 1), padding=((pad, pad), (pad, pad)),
        dimension_numbers=("NCHW", "OIHW", "NCHW"),
    ) + b[None, :, None, None]
    assert out.shape == (N, Cout, H, W)
    assert jnp.allclose(out, ref, atol=1e-4, rtol=1e-4)

    print("KERNEL_OK")
</pallas_src>

<mosaic_0001>
module attributes {stable_mosaic.version = 11 : i64} {
  func.func @_conv2d_kernel(%arg0: i32, %arg1: memref<2x4x16x16xf32, #tpu.memory_space<vmem>>, %arg2: memref<3x64x128xf32, #tpu.memory_space<vmem>>, %arg3: memref<1x128xf32, #tpu.memory_space<vmem>>, %arg4: memref<32x128xf32, #tpu.memory_space<vmem>>) attributes {dimension_semantics = [#tpu.dimension_semantics<arbitrary>], iteration_bounds = array<i64: 1>, scalar_prefetch = 0 : i64, scratch_operands = 0 : i64, tpu.core_type = #tpu.core_type<tc>, window_params = [{pipeline_mode = #tpu.pipeline_mode<synchronous>, transform_indices = @transform_0, window_bounds = array<i64: 2, 4, 16, 16>}, {pipeline_mode = #tpu.pipeline_mode<synchronous>, transform_indices = @transform_1, window_bounds = array<i64: 3, 64, 128>}, {pipeline_mode = #tpu.pipeline_mode<synchronous>, transform_indices = @transform_2, window_bounds = array<i64: 1, 128>}, {pipeline_mode = #tpu.pipeline_mode<synchronous>, transform_indices = @transform_3, window_bounds = array<i64: 32, 128>}]} {
    %c0 = arith.constant 0 : index
    %c0_0 = arith.constant 0 : index
    %c0_1 = arith.constant 0 : index
    %c0_2 = arith.constant 0 : index
    %0 = vector.load %arg1[%c0, %c0_0, %c0_1, %c0_2] : memref<2x4x16x16xf32, #tpu.memory_space<vmem>>, vector<1x1x16x16xf32>
    %1 = vector.shape_cast %0 : vector<1x1x16x16xf32> to vector<16x16xf32>
    %c0_3 = arith.constant 0 : index
    %c1 = arith.constant 1 : index
    %c0_4 = arith.constant 0 : index
    %c0_5 = arith.constant 0 : index
    %2 = vector.load %arg1[%c0_3, %c1, %c0_4, %c0_5] : memref<2x4x16x16xf32, #tpu.memory_space<vmem>>, vector<1x1x16x16xf32>
    %3 = vector.shape_cast %2 : vector<1x1x16x16xf32> to vector<16x16xf32>
    %c0_6 = arith.constant 0 : index
    %c2 = arith.constant 2 : index
    %c0_7 = arith.constant 0 : index
    %c0_8 = arith.constant 0 : index
    %4 = vector.load %arg1[%c0_6, %c2, %c0_7, %c0_8] : memref<2x4x16x16xf32, #tpu.memory_space<vmem>>, vector<1x1x16x16xf32>
    %5 = vector.shape_cast %4 : vector<1x1x16x16xf32> to vector<16x16xf32>
    %c0_9 = arith.constant 0 : index
    %c3 = arith.constant 3 : index
    %c0_10 = arith.constant 0 : index
    %c0_11 = arith.constant 0 : index
    %6 = vector.load %arg1[%c0_9, %c3, %c0_10, %c0_11] : memref<2x4x16x16xf32, #tpu.memory_space<vmem>>, vector<1x1x16x16xf32>
    %7 = vector.shape_cast %6 : vector<1x1x16x16xf32> to vector<16x16xf32>
    %8 = tpu.concatenate %1, %3, %5, %7 in 1 : vector<16x16xf32>, vector<16x16xf32>, vector<16x16xf32>, vector<16x16xf32> -> vector<16x64xf32>
    %c1_12 = arith.constant 1 : index
    %c0_13 = arith.constant 0 : index
    %c0_14 = arith.constant 0 : index
    %c0_15 = arith.constant 0 : index
    %9 = vector.load %arg1[%c1_12, %c0_13, %c0_14, %c0_15] : memref<2x4x16x16xf32, #tpu.memory_space<vmem>>, vector<1x1x16x16xf32>
    %10 = vector.shape_cast %9 : vector<1x1x16x16xf32> to vector<16x16xf32>
    %c1_16 = arith.constant 1 : index
    %c1_17 = arith.constant 1 : index
    %c0_18 = arith.constant 0 : index
    %c0_19 = arith.constant 0 : index
    %11 = vector.load %arg1[%c1_16, %c1_17, %c0_18, %c0_19] : memref<2x4x16x16xf32, #tpu.memory_space<vmem>>, vector<1x1x16x16xf32>
    %12 = vector.shape_cast %11 : vector<1x1x16x16xf32> to vector<16x16xf32>
    %c1_20 = arith.constant 1 : index
    %c2_21 = arith.constant 2 : index
    %c0_22 = arith.constant 0 : index
    %c0_23 = arith.constant 0 : index
    %13 = vector.load %arg1[%c1_20, %c2_21, %c0_22, %c0_23] : memref<2x4x16x16xf32, #tpu.memory_space<vmem>>, vector<1x1x16x16xf32>
    %14 = vector.shape_cast %13 : vector<1x1x16x16xf32> to vector<16x16xf32>
    %c1_24 = arith.constant 1 : index
    %c3_25 = arith.constant 3 : index
    %c0_26 = arith.constant 0 : index
    %c0_27 = arith.constant 0 : index
    %15 = vector.load %arg1[%c1_24, %c3_25, %c0_26, %c0_27] : memref<2x4x16x16xf32, #tpu.memory_space<vmem>>, vector<1x1x16x16xf32>
    %16 = vector.shape_cast %15 : vector<1x1x16x16xf32> to vector<16x16xf32>
    %17 = tpu.concatenate %10, %12, %14, %16 in 1 : vector<16x16xf32>, vector<16x16xf32>, vector<16x16xf32>, vector<16x16xf32> -> vector<16x64xf32>
    %18 = tpu.concatenate %8, %17 in 0 : vector<16x64xf32>, vector<16x64xf32> -> vector<32x64xf32>
    %c0_28 = arith.constant 0 : index
    %c0_29 = arith.constant 0 : index
    %19 = vector.load %arg3[%c0_28, %c0_29] : memref<1x128xf32, #tpu.memory_space<vmem>>, vector<1x128xf32>
    %20 = vector.shape_cast %19 : vector<1x128xf32> to vector<1x128xf32>
    %21 = vector.broadcast %20 : vector<1x128xf32> to vector<32x128xf32>
    %22 = tpu.iota {dimensions = array<i32: 0>} : vector<32x128xi32>
    %c16_i32 = arith.constant 16 : i32
    %c0_i32 = arith.constant 0 : i32
    %23 = arith.cmpi eq, %c16_i32, %c0_i32 : i32
    %c1_i32 = arith.constant 1 : i32
    %24 = arith.select %23, %c1_i32, %c16_i32 : i32
    %25 = vector.broadcast %24 : i32 to vector<32x128xi32>
    %26 = arith.remsi %22, %25 : vector<32x128xi32>
    %c0_i32_30 = arith.constant 0 : i32
    %27 = vector.broadcast %c0_i32_30 : i32 to vector<32x128xi32>
    %28 = arith.cmpi ne, %26, %27 : vector<32x128xi32>
    %c0_i32_31 = arith.constant 0 : i32
    %29 = vector.broadcast %c0_i32_31 : i32 to vector<32x128xi32>
    %30 = arith.cmpi slt, %26, %29 : vector<32x128xi32>
    %c0_i32_32 = arith.constant 0 : i32
    %31 = arith.cmpi slt, %24, %c0_i32_32 : i32
    %32 = vector.broadcast %31 : i1 to vector<32x128xi1>
    %33 = vector.broadcast %32 : vector<32x128xi1> to vector<32x128xi1>
    %34 = arith.xori %30, %33 : vector<32x128xi1>
    %35 = arith.andi %34, %28 : vector<32x128xi1>
    %36 = vector.broadcast %24 : i32 to vector<32x128xi32>
    %37 = arith.addi %26, %36 : vector<32x128xi32>
    %38 = arith.select %35, %37, %26 : vector<32x128xi1>, vector<32x128xi32>
    %c0_33 = arith.constant 0 : index
    %c0_34 = arith.constant 0 : index
    %c0_35 = arith.constant 0 : index
    %39 = vector.load %arg2[%c0_33, %c0_34, %c0_35] : memref<3x64x128xf32, #tpu.memory_space<vmem>>, vector<1x64x128xf32>
    %40 = vector.shape_cast %39 : vector<1x64x128xf32> to vector<64x128xf32>
    %cst = arith.constant dense<0.000000e+00> : vector<32x128xf32>
    %41 = tpu.matmul %18, %40, %cst {dimension_numbers = #tpu.dot_dimension_numbers<[1], [0], [0], [1], [0, 0, 1, 1], [], []>} : vector<32x64xf32>, vector<64x128xf32>, vector<32x128xf32> -> vector<32x128xf32>
    %c1_i32_36 = arith.constant 1 : i32
    %42 = tpu.dynamic_rotate %41 by %c1_i32_36 dim 0 : vector<32x128xf32>, i32 -> vector<32x128xf32>
    %c-1_i32 = arith.constant -1 : i32
    %43 = vector.broadcast %c-1_i32 : i32 to vector<32x128xi32>
    %44 = arith.addi %38, %43 : vector<32x128xi32>
    %c0_i32_37 = arith.constant 0 : i32
    %45 = vector.broadcast %c0_i32_37 : i32 to vector<32x128xi32>
    %46 = arith.cmpi sge, %44, %45 : vector<32x128xi32>
    %c-1_i32_38 = arith.constant -1 : i32
    %47 = vector.broadcast %c-1_i32_38 : i32 to vector<32x128xi32>
    %48 = arith.addi %38, %47 : vector<32x128xi32>
    %c16_i32_39 = arith.constant 16 : i32
    %49 = vector.broadcast %c16_i32_39 : i32 to vector<32x128xi32>
    %50 = arith.cmpi slt, %48, %49 : vector<32x128xi32>
    %51 = arith.andi %46, %50 : vector<32x128xi1>
    %cst_40 = arith.constant 0.000000e+00 : f32
    %52 = vector.broadcast %cst_40 : f32 to vector<32x128xf32>
    %53 = arith.select %51, %42, %52 : vector<32x128xi1>, vector<32x128xf32>
    %54 = arith.addf %21, %53 : vector<32x128xf32>
    %c1_41 = arith.constant 1 : index
    %c0_42 = arith.constant 0 : index
    %c0_43 = arith.constant 0 : index
    %55 = vector.load %arg2[%c1_41, %c0_42, %c0_43] : memref<3x64x128xf32, #tpu.memory_space<vmem>>, vector<1x64x128xf32>
    %56 = vector.shape_cast %55 : vector<1x64x128xf32> to vector<64x128xf32>
    %cst_44 = arith.constant dense<0.000000e+00> : vector<32x128xf32>
    %57 = tpu.matmul %18, %56, %cst_44 {dimension_numbers = #tpu.dot_dimension_numbers<[1], [0], [0], [1], [0, 0, 1, 1], [], []>} : vector<32x64xf32>, vector<64x128xf32>, vector<32x128xf32> -> vector<32x128xf32>
    %58 = arith.addf %54, %57 : vector<32x128xf32>
    %c2_45 = arith.constant 2 : index
    %c0_46 = arith.constant 0 : index
    %c0_47 = arith.constant 0 : index
    %59 = vector.load %arg2[%c2_45, %c0_46, %c0_47] : memref<3x64x128xf32, #tpu.memory_space<vmem>>, vector<1x64x128xf32>
    %60 = vector.shape_cast %59 : vector<1x64x128xf32> to vector<64x128xf32>
    %cst_48 = arith.constant dense<0.000000e+00> : vector<32x128xf32>
    %61 = tpu.matmul %18, %60, %cst_48 {dimension_numbers = #tpu.dot_dimension_numbers<[1], [0], [0], [1], [0, 0, 1, 1], [], []>} : vector<32x64xf32>, vector<64x128xf32>, vector<32x128xf32> -> vector<32x128xf32>
    %c31_i32 = arith.constant 31 : i32
    %62 = tpu.dynamic_rotate %61 by %c31_i32 dim 0 : vector<32x128xf32>, i32 -> vector<32x128xf32>
    %c1_i32_49 = arith.constant 1 : i32
    %63 = vector.broadcast %c1_i32_49 : i32 to vector<32x128xi32>
    %64 = arith.addi %38, %63 : vector<32x128xi32>
    %c0_i32_50 = arith.constant 0 : i32
    %65 = vector.broadcast %c0_i32_50 : i32 to vector<32x128xi32>
    %66 = arith.cmpi sge, %64, %65 : vector<32x128xi32>
    %c1_i32_51 = arith.constant 1 : i32
    %67 = vector.broadcast %c1_i32_51 : i32 to vector<32x128xi32>
    %68 = arith.addi %38, %67 : vector<32x128xi32>
    %c16_i32_52 = arith.constant 16 : i32
    %69 = vector.broadcast %c16_i32_52 : i32 to vector<32x128xi32>
    %70 = arith.cmpi slt, %68, %69 : vector<32x128xi32>
    %71 = arith.andi %66, %70 : vector<32x128xi1>
    %cst_53 = arith.constant 0.000000e+00 : f32
    %72 = vector.broadcast %cst_53 : f32 to vector<32x128xf32>
    %73 = arith.select %71, %62, %72 : vector<32x128xi1>, vector<32x128xf32>
    %74 = arith.addf %58, %73 : vector<32x128xf32>
    %c0_54 = arith.constant 0 : index
    %c0_55 = arith.constant 0 : index
    %75 = vector.load %arg4[%c0_54, %c0_55] : memref<32x128xf32, #tpu.memory_space<vmem>>, vector<32x128xf32>
    tpu.vector_store %arg4[%c0_54, %c0_55], %74 {strides = array<i32>} : memref<32x128xf32, #tpu.memory_space<vmem>>, vector<32x128xf32>,
    return
  }
  func.func @transform_0(%arg0: i32) -> (i32, i32, i32, i32) {
    %c0_i32 = arith.constant 0 : i32
    %c0_i32_0 = arith.constant 0 : i32
    %c0_i32_1 = arith.constant 0 : i32
    %c0_i32_2 = arith.constant 0 : i32
    %c0_i32_3 = arith.constant 0 : i32
    return %c0_i32, %c0_i32_0, %c0_i32_1, %c0_i32_2 : i32, i32, i32, i32
  }
  func.func @transform_1(%arg0: i32) -> (i32, i32, i32) {
    %c0_i32 = arith.constant 0 : i32
    %c0_i32_0 = arith.constant 0 : i32
    %c0_i32_1 = arith.constant 0 : i32
    %c0_i32_2 = arith.constant 0 : i32
    return %c0_i32, %c0_i32_0, %c0_i32_1 : i32, i32, i32
  }
  func.func @transform_2(%arg0: i32) -> (i32, i32) {
    %c0_i32 = arith.constant 0 : i32
    %c0_i32_0 = arith.constant 0 : i32
    %c0_i32_1 = arith.constant 0 : i32
    return %c0_i32, %c0_i32_0 : i32, i32
  }
  func.func @transform_3(%arg0: i32) -> (i32, i32) {
    %c0_i32 = arith.constant 0 : i32
    %c0_i32_0 = arith.constant 0 : i32
    %c0_i32_1 = arith.constant 0 : i32
    return %c0_i32, %c0_i32_0 : i32, i32
  }
}

</mosaic_0001>

<llo_original>
// kernel: conv2d_pallas.1
$region0: #{conv2d_pallas.1}
  #allocation0 [shape = 'u32[]', space=smem, size = 0x4, offset = 0x4, fixed_abs, tag = 'smem constant byte address 0x4 - core index']
  #allocation1 [shape = 'u32[144,128]{1,0:T(1,128)}', space=vmem, size = 0x12000, scoped, tag = 'internal scratch']
  %s0 = inlined_call_operand.hbm [shape: f32[2,4,16,16], index: 0, kind: input, shape index: {}]
  %s1 = inlined_call_operand.hbm [shape: f32[3,64,128], index: 1, kind: input, shape index: {}]
  %s2 = inlined_call_operand.vmem [shape: f32[1,128], index: 2, kind: input, shape index: {}]
  %s3 = inlined_call_operand.vmem [shape: f32[32,128], index: 3, kind: output, shape index: {}]
  %s4 = sld [smem:[#allocation0]]
  $region30: #{conv2d_pallas.1} parent=0
    _
  %s6 = ssub.s32 1, %s4
  %s7 = scalar_select 0, %s6, %s4
  $region1: #{conv2d_pallas.1} parent=0
    #allocation2 [shape = 'u8[65536]{0}', space=vmem, size = 0x10000, scoped, tag = 'input window, operand 0, single buffered']
    #allocation3 [shape = 's32[1]{0}', space=sflag, size = 0x4, scoped, tag = 'scoped memory for conv2d_pallas.1']
    #allocation4 [shape = 'u8[98304]{0}', space=vmem, size = 0x18000, scoped, tag = 'input window, operand 1, single buffered']
    #allocation5 [shape = 's32[1]{0}', space=sflag, size = 0x4, scoped, tag = 'scoped memory for conv2d_pallas.1']
    %8 = vsyncpa [#allocation3], 0
    %9 = vsyncpa [#allocation5], 0
    // Predicated region
    $region2: #{conv2d_pallas.1} parent=1 // pred_check
      _
    $region3: #{conv2d_pallas.1} parent=1 // pred_check_branch
      %11 = sbr.rel (0) target = $region5
    $region4: #{conv2d_pallas.1} parent=1 // pred_region
      %s13 = ssub.s32 2048, 2048
      %14 = vsyncadd [#allocation3], %s13
      %s15 = sshll.u32 [#allocation2], 4
      %s16 = int_to_ptr.vmem [resolvable:$true] %s15
      %21 = dma.hbm_to_vmem [thread:$0]  %s0, 2048, %s16, [#allocation3], 128, 128, 8
    $region5: #{conv2d_pallas.1} parent=1 // pred_fallthru
      _
    // Predicated region
    $region6: #{conv2d_pallas.1} parent=1 // pred_check
      _
    $region7: #{conv2d_pallas.1} parent=1 // pred_check_branch
      %23 = sbr.rel (0) target = $region9
    $region8: #{conv2d_pallas.1} parent=1 // pred_region
      %s25 = ssub.s32 3072, 3072
      %26 = vsyncadd [#allocation5], %s25
      %s27 = sshll.u32 [#allocation4], 4
      %s28 = int_to_ptr.vmem [resolvable:$true] %s27
      %33 = dma.hbm_to_vmem [thread:$0]  %s1, 3072, %s28, [#allocation5], 128, 128, 8
    $region9: #{conv2d_pallas.1} parent=1 // pred_fallthru
      _
    // Predicated region
    $region10: #{conv2d_pallas.1} parent=1 // pred_check
      _
    $region11: #{conv2d_pallas.1} parent=1 // pred_check_branch
      %35 = sbr.rel (0) target = $region13
    $region12: #{conv2d_pallas.1} parent=1 // pred_region
      _
    $region13: #{conv2d_pallas.1} parent=1 // pred_fallthru
      _
    // Predicated region
    $region14: #{conv2d_pallas.1} parent=1 // pred_check
      _
    $region15: #{conv2d_pallas.1} parent=1 // pred_check_branch
      %37 = sbr.rel (0) target = $region17
    $region16: #{conv2d_pallas.1} parent=1 // pred_region
      %38 = dma.done [#allocation3], 2048
    $region17: #{conv2d_pallas.1} parent=1 // pred_fallthru
      _
    // Predicated region
    $region18: #{conv2d_pallas.1} parent=1 // pred_check
      _
    $region19: #{conv2d_pallas.1} parent=1 // pred_check_branch
      %40 = sbr.rel (0) target = $region21
    $region20: #{conv2d_pallas.1} parent=1 // pred_region
      %41 = dma.done [#allocation5], 3072
    $region21: #{conv2d_pallas.1} parent=1 // pred_fallthru
      _
    %v42 = vld [vmem:[#allocation2] sm:$0xff]
    %v43 = vld [vmem:[#allocation2 + $0x8] sm:$0xff]
    %s44 = scalar_lea.vmem [#allocation2], 16
    %v45 = vld [vmem:[%s44] sm:$0xff]
    %v46 = vld [vmem:[%s44 + $0x8] sm:$0xff]
    %s47 = scalar_lea.vmem [#allocation2], 32
    %v48 = vld [vmem:[%s47] sm:$0xff]
    %v49 = vld [vmem:[%s47 + $0x8] sm:$0xff]
    %s50 = scalar_lea.vmem [#allocation2], 48
    %v51 = vld [vmem:[%s50] sm:$0xff]
    %v52 = vld [vmem:[%s50 + $0x8] sm:$0xff]
    %55 = vrot.lane.b32.xlu0 %v45, 16
    %v56 = vpop.permute.xlu0 %55
    %57 = vrot.lane.b32.xlu0 %v46, 16
    %v58 = vpop.permute.xlu0 %57
    %63 = vrot.lane.b32.xlu0 %v48, 32
    %v64 = vpop.permute.xlu0 %63
    %65 = vrot.lane.b32.xlu0 %v49, 32
    %v66 = vpop.permute.xlu0 %65
    %71 = vrot.lane.b32.xlu0 %v51, 48
    %v72 = vpop.permute.xlu0 %71
    %73 = vrot.lane.b32.xlu0 %v52, 48
    %v74 = vpop.permute.xlu0 %73
    %vm77 = vcmask 130048
    %v78 = vsel %vm77, %v42, %v56
    %v79 = vsel %vm77, %v43, %v58
    %vm80 = vcmask 261120
    %v81 = vsel %vm80, %v78, %v64
    %v82 = vsel %vm80, %v79, %v66
    %vm83 = vcmask 392192
    %v84 = vsel %vm83, %v81, %v72
    %v85 = vsel %vm83, %v82, %v74
    %s86 = scalar_lea.vmem [#allocation2], 64
    %v87 = vld [vmem:[%s86] sm:$0xff]
    %v88 = vld [vmem:[%s86 + $0x8] sm:$0xff]
    %s89 = scalar_lea.vmem [#allocation2], 80
    %v90 = vld [vmem:[%s89] sm:$0xff]
    %v91 = vld [vmem:[%s89 + $0x8] sm:$0xff]
    %s92 = scalar_lea.vmem [#allocation2], 96
    %v93 = vld [vmem:[%s92] sm:$0xff]
    %v94 = vld [vmem:[%s92 + $0x8] sm:$0xff]
    %s95 = scalar_lea.vmem [#allocation2], 112
    %v96 = vld [vmem:[%s95] sm:$0xff]
    %v97 = vld [vmem:[%s95 + $0x8] sm:$0xff]
    %100 = vrot.lane.b32.xlu0 %v90, 16
    %v101 = vpop.permute.xlu0 %100
    %102 = vrot.lane.b32.xlu0 %v91, 16
    %v103 = vpop.permute.xlu0 %102
    %108 = vrot.lane.b32.xlu0 %v93, 32
    %v109 = vpop.permute.xlu0 %108
    %110 = vrot.lane.b32.xlu0 %v94, 32
    %v111 = vpop.permute.xlu0 %110
    %116 = vrot.lane.b32.xlu0 %v96, 48
    %v117 = vpop.permute.xlu0 %116
    %118 = vrot.lane.b32.xlu0 %v97, 48
    %v119 = vpop.permute.xlu0 %118
    %v122 = vsel %vm77, %v87, %v101
    %v123 = vsel %vm77, %v88, %v103
    %v124 = vsel %vm80, %v122, %v109
    %v125 = vsel %vm80, %v123, %v111
    %v126 = vsel %vm83, %v124, %v117
    %v127 = vsel %vm83, %v125, %v119
    %v128 = vld [vmem:[%s2] sm:$0x1]
    %v130 = vlaneseq
    %v131 = vshrl.u32 %v130, 7
    %v132 = vsub.s32 0, %v131
    %v133 = vrot.slane %v128, %v132
    %v135 = vlaneseq
    %v136 = vshrl.u32 %v135, 7
    %v137 = vadd.s32 %v136, 8
    %v138 = vadd.s32 %v136, 16
    %v139 = vadd.s32 %v136, 24
    %vm140 = vcmp.lt.s32.totalorder %v136, 0
    %v141 = vsub.s32 0, %v136
    %v142 = vsel %vm140, %v141, %v136
    %v143 = vshrl.u32 %v142, 4
    %v144 = vand.u32 %v142, 15
    %v145 = vsub.s32 0, %v144
    %v146 = vsel %vm140, %v145, %v144
    %vm147 = vcmp.lt.s32.totalorder %v137, 0
    %v148 = vsub.s32 0, %v137
    %v149 = vsel %vm147, %v148, %v137
    %v150 = vshrl.u32 %v149, 4
    %v151 = vand.u32 %v149, 15
    %v152 = vsub.s32 0, %v151
    %v153 = vsel %vm147, %v152, %v151
    %vm154 = vcmp.lt.s32.totalorder %v138, 0
    %v155 = vsub.s32 0, %v138
    %v156 = vsel %vm154, %v155, %v138
    %v157 = vshrl.u32 %v156, 4
    %v158 = vand.u32 %v156, 15
    %v159 = vsub.s32 0, %v158
    %v160 = vsel %vm154, %v159, %v158
    %vm161 = vcmp.lt.s32.totalorder %v139, 0
    %v162 = vsub.s32 0, %v139
    %v163 = vsel %vm161, %v162, %v139
    %v164 = vshrl.u32 %v163, 4
    %v165 = vand.u32 %v163, 15
    %v166 = vsub.s32 0, %v165
    %v167 = vsel %vm161, %v166, %v165
    %vm168 = vcmp.ne.s32.totalorder %v146, 0
    %vm169 = vcmp.ne.s32.totalorder %v153, 0
    %vm170 = vcmp.ne.s32.totalorder %v160, 0
    %vm171 = vcmp.ne.s32.totalorder %v167, 0
    %vm172 = vcmp.lt.s32.totalorder %v146, 0
    %vm173 = vcmp.lt.s32.totalorder %v153, 0
    %vm174 = vcmp.lt.s32.totalorder %v160, 0
    %vm175 = vcmp.lt.s32.totalorder %v167, 0
    %vm176 = vmand %vm172, %vm168
    %vm177 = vmand %vm173, %vm169
    %vm178 = vmand %vm174, %vm170
    %vm179 = vmand %vm175, %vm171
    %v180 = vadd.s32 %v146, 16
    %v181 = vadd.s32 %v153, 16
    %v182 = vadd.s32 %v160, 16
    %v183 = vadd.s32 %v167, 16
    %v184 = vsel %vm176, %v180, %v146
    %v185 = vsel %vm177, %v181, %v153
    %v186 = vsel %vm178, %v182, %v160
    %v187 = vsel %vm179, %v183, %v167
    %v188 = vld [vmem:[#allocation4] sm:$0xff]
    %v189 = vld [vmem:[#allocation4 + $0x8] sm:$0xff]
    %v190 = vld [vmem:[#allocation4 + $0x10] sm:$0xff]
    %v191 = vld [vmem:[#allocation4 + $0x18] sm:$0xff]
    %v192 = vld [vmem:[#allocation4 + $0x20] sm:$0xff]
    %v193 = vld [vmem:[#allocation4 + $0x28] sm:$0xff]
    %v194 = vld [vmem:[#allocation4 + $0x30] sm:$0xff]
    %v195 = vld [vmem:[#allocation4 + $0x38] sm:$0xff]
    %vm196 = vcmask 523264
    %v198 = vsel %vm196, %v84, 0
    %v201 = vsel %vm196, %v85, 0
    %v204 = vsel %vm196, %v126, 0
    %v207 = vsel %vm196, %v127, 0
    %209 = vmatprep.subr.mxu0 0.0
    %210 = vmatpush1.msra.mxu0 %v188
    %211 = vmatprep.subr.mxu0 0.0
    %212 = vmatpush1.msra.mxu0 %v189
    %213 = vmatprep.subr.mxu0 0.0
    %214 = vmatpush1.msra.mxu0 %v190
    %215 = vmatprep.subr.mxu0 0.0
    %216 = vmatpush1.msra.mxu0 %v191
    %217 = vmatprep.subr.mxu0 0.0
    %218 = vmatpush1.msra.mxu0 %v192
    %219 = vmatprep.subr.mxu0 0.0
    %220 = vmatpush1.msra.mxu0 %v193
    %221 = vmatprep.subr.mxu0 0.0
    %222 = vmatpush1.msra.mxu0 %v194
    %223 = vmatprep.subr.mxu0 0.0
    %224 = vmatpush1.msra.mxu0 %v195
    %225 = vmatprep.subr.mxu0 0.0
    %226 = vmatpush1.msra.mxu0 0.0
    %227 = vmatprep.subr.mxu0 0.0
    %228 = vmatpush1.msra.mxu0 0.0
    %229 = vmatprep.subr.mxu0 0.0
    %230 = vmatpush1.msra.mxu0 0.0
    %231 = vmatprep.subr.mxu0 0.0
    %232 = vmatpush1.msra.mxu0 0.0
    %233 = vmatprep.subr.mxu0 0.0
    %234 = vmatpush1.msra.mxu0 0.0
    %235 = vmatprep.subr.mxu0 0.0
    %236 = vmatpush1.msra.mxu0 0.0
    %237 = vmatprep.subr.mxu0 0.0
    %238 = vmatpush1.msra.mxu0 0.0
    %239 = vmatprep.subr.mxu0 0.0
    %240 = vmatpush1.msra.mxu0 0.0
    %241 = vmatprep.subr.mxu0 0.0
    %242 = vmatpush1.msra.mxu0 0.0
    %243 = vmatprep.subr.mxu0 0.0
    %244 = vmatpush1.msra.mxu0 0.0
    %245 = vmatprep.subr.mxu0 0.0
    %246 = vmatpush1.msra.mxu0 0.0
    %247 = vmatprep.subr.mxu0 0.0
    %248 = vmatpush1.msra.mxu0 0.0
    %249 = vmatprep.subr.mxu0 0.0
    %250 = vmatpush1.msra.mxu0 0.0
    %251 = vmatprep.subr.mxu0 0.0
    %252 = vmatpush1.msra.mxu0 0.0
    %253 = vmatprep.subr.mxu0 0.0
    %254 = vmatpush1.msra.mxu0 0.0
    %255 = vmatprep.subr.mxu0 0.0
    %256 = vmatpush1.msra.mxu0 0.0
    %257 = vmatprep.subr.mxu0 0.0
    %258 = vmatpush1.msra.mxu0 0.0
    %259 = vmatprep.subr.mxu0 0.0
    %260 = vmatpush1.msra.mxu0 0.0
    %261 = vmatprep.subr.mxu0 0.0
    %262 = vmatpush1.msra.mxu0 0.0
    %263 = vmatprep.subr.mxu0 0.0
    %264 = vmatpush1.msra.mxu0 0.0
    %265 = vmatprep.subr.mxu0 0.0
    %266 = vmatpush1.msra.mxu0 0.0
    %267 = vmatprep.subr.mxu0 0.0
    %268 = vmatpush1.msra.mxu0 0.0
    %269 = vmatprep.subr.mxu0 0.0
    %270 = vmatpush1.msra.mxu0 0.0
    %271 = vmatprep.subr.mxu0 0.0
    %272 = vmatpush1.msra.mxu0 0.0
    %273 = vmatprep.mubr.f32.mxu0 0.0
    %274 = vmatmul.mubr.f32.gmra.mrb[0].mxu0 %v198
    %v275 = vpop.f32.mrb[0].mxu0
    %v276 = vadd.f32 0.0, %v275
    %v277 = vpop.f32.mrb[0].mxu0
    %278 = vmatprep.mubr.f32.mxu0 0.0
    %279 = vmatmul.mubr.f32.gmra.mrb[0].mxu0 %v201
    %v280 = vpop.f32.mrb[0].mxu0
    %v281 = vadd.f32 0.0, %v280
    %v282 = vpop.f32.mrb[0].mxu0
    %283 = vmatprep.mubr.f32.mxu0 0.0
    %284 = vmatmul.mubr.f32.gmra.mrb[0].mxu0 %v204
    %v285 = vpop.f32.mrb[0].mxu0
    %v286 = vadd.f32 0.0, %v285
    %v287 = vpop.f32.mrb[0].mxu0
    %288 = vmatprep.mubr.f32.mxu0 0.0
    %289 = vmatmul.mubr.f32.gmra.mrb[0].mxu0 %v207
    %v290 = vpop.f32.mrb[0].mxu0
    %v291 = vadd.f32 0.0, %v290
    %v292 = vpop.f32.mrb[0].mxu0
    %293 = vdwg.mxu0
    %v294 = vrot.slane %v276, 7
    %v295 = vrot.slane %v281, 7
    %v296 = vrot.slane %v286, 7
    %v297 = vrot.slane %v291, 7
    %vm298 = vcmp.lt.s32.totalorder %v136, 1
    %v299 = vsel %vm298, %v296, %v297
    %v300 = vsel %vm298, %v295, %v296
    %v301 = vsel %vm298, %v294, %v295
    %v302 = vsel %vm298, %v297, %v294
    %v303 = vadd.s32 %v184, 4294967295
    %v304 = vadd.s32 %v185, 4294967295
    %v305 = vadd.s32 %v186, 4294967295
    %v306 = vadd.s32 %v187, 4294967295
    %vm307 = vcmp.ge.s32.totalorder %v303, 0
    %vm308 = vcmp.ge.s32.totalorder %v304, 0
    %vm309 = vcmp.ge.s32.totalorder %v305, 0
    %vm310 = vcmp.ge.s32.totalorder %v306, 0
    %vm311 = vcmp.lt.s32.totalorder %v303, 16
    %vm312 = vcmp.lt.s32.totalorder %v304, 16
    %vm313 = vcmp.lt.s32.totalorder %v305, 16
    %vm314 = vcmp.lt.s32.totalorder %v306, 16
    %vm315 = vmand %vm307, %vm311
    %vm316 = vmand %vm308, %vm312
    %vm317 = vmand %vm309, %vm313
    %vm318 = vmand %vm310, %vm314
    %v319 = vsel %vm315, %v302, 0.0
    %v320 = vsel %vm316, %v301, 0.0
    %v321 = vsel %vm317, %v300, 0.0
    %v322 = vsel %vm318, %v299, 0.0
    %v323 = vadd.f32 %v133, %v319
    %v324 = vadd.f32 %v133, %v320
    %v325 = vadd.f32 %v133, %v321
    %v326 = vadd.f32 %v133, %v322
    %s327 = scalar_lea.vmem [#allocation4], 64
    %v328 = vld [vmem:[%s327] sm:$0xff]
    %v329 = vld [vmem:[%s327 + $0x8] sm:$0xff]
    %v330 = vld [vmem:[%s327 + $0x10] sm:$0xff]
    %v331 = vld [vmem:[%s327 + $0x18] sm:$0xff]
    %v332 = vld [vmem:[%s327 + $0x20] sm:$0xff]
    %v333 = vld [vmem:[%s327 + $0x28] sm:$0xff]
    %v334 = vld [vmem:[%s327 + $0x30] sm:$0xff]
    %v335 = vld [vmem:[%s327 + $0x38] sm:$0xff]
    %336 = vmatprep.subr.mxu0 0.0
    %337 = vmatpush1.msra.mxu0 %v328
    %338 = vmatprep.subr.mxu0 0.0
    %339 = vmatpush1.msra.mxu0 %v329
    %340 = vmatprep.subr.mxu0 0.0
    %341 = vmatpush1.msra.mxu0 %v330
    %342 = vmatprep.subr.mxu0 0.0
    %343 = vmatpush1.msra.mxu0 %v331
    %344 = vmatprep.subr.mxu0 0.0
    %345 = vmatpush1.msra.mxu0 %v332
    %346 = vmatprep.subr.mxu0 0.0
    %347 = vmatpush1.msra.mxu0 %v333
    %348 = vmatprep.subr.mxu0 0.0
    %349 = vmatpush1.msra.mxu0 %v334
    %350 = vmatprep.subr.mxu0 0.0
    %351 = vmatpush1.msra.mxu0 %v335
    %352 = vmatprep.subr.mxu0 0.0
    %353 = vmatpush1.msra.mxu0 0.0
    %354 = vmatprep.subr.mxu0 0.0
    %355 = vmatpush1.msra.mxu0 0.0
    %356 = vmatprep.subr.mxu0 0.0
    %357 = vmatpush1.msra.mxu0 0.0
    %358 = vmatprep.subr.mxu0 0.0
    %359 = vmatpush1.msra.mxu0 0.0
    %360 = vmatprep.subr.mxu0 0.0
    %361 = vmatpush1.msra.mxu0 0.0
    %362 = vmatprep.subr.mxu0 0.0
    %363 = vmatpush1.msra.mxu0 0.0
    %364 = vmatprep.subr.mxu0 0.0
    %365 = vmatpush1.msra.mxu0 0.0
    %366 = vmatprep.subr.mxu0 0.0
    %367 = vmatpush1.msra.mxu0 0.0
    %368 = vmatprep.subr.mxu0 0.0
    %369 = vmatpush1.msra.mxu0 0.0
    %370 = vmatprep.subr.mxu0 0.0
    %371 = vmatpush1.msra.mxu0 0.0
    %372 = vmatprep.subr.mxu0 0.0
    %373 = vmatpush1.msra.mxu0 0.0
    %374 = vmatprep.subr.mxu0 0.0
    %375 = vmatpush1.msra.mxu0 0.0
    %376 = vmatprep.subr.mxu0 0.0
    %377 = vmatpush1.msra.mxu0 0.0
    %378 = vmatprep.subr.mxu0 0.0
    %379 = vmatpush1.msra.mxu0 0.0
    %380 = vmatprep.subr.mxu0 0.0
    %381 = vmatpush1.msra.mxu0 0.0
    %382 = vmatprep.subr.mxu0 0.0
    %383 = vmatpush1.msra.mxu0 0.0
    %384 = vmatprep.subr.mxu0 0.0
    %385 = vmatpush1.msra.mxu0 0.0
    %386 = vmatprep.subr.mxu0 0.0
    %387 = vmatpush1.msra.mxu0 0.0
    %388 = vmatprep.subr.mxu0 0.0
    %389 = vmatpush1.msra.mxu0 0.0
    %390 = vmatprep.subr.mxu0 0.0
    %391 = vmatpush1.msra.mxu0 0.0
    %392 = vmatprep.subr.mxu0 0.0
    %393 = vmatpush1.msra.mxu0 0.0
    %394 = vmatprep.subr.mxu0 0.0
    %395 = vmatpush1.msra.mxu0 0.0
    %396 = vmatprep.subr.mxu0 0.0
    %397 = vmatpush1.msra.mxu0 0.0
    %398 = vmatprep.subr.mxu0 0.0
    %399 = vmatpush1.msra.mxu0 0.0
    %400 = vmatprep.mubr.f32.mxu0 0.0
    %401 = vmatmul.mubr.f32.gmra.mrb[0].mxu0 %v198
    %v402 = vpop.f32.mrb[0].mxu0
    %v403 = vadd.f32 0.0, %v402
    %v404 = vpop.f32.mrb[0].mxu0
    %405 = vmatprep.mubr.f32.mxu0 0.0
    %406 = vmatmul.mubr.f32.gmra.mrb[0].mxu0 %v201
    %v407 = vpop.f32.mrb[0].mxu0
    %v408 = vadd.f32 0.0, %v407
    %v409 = vpop.f32.mrb[0].mxu0
    %410 = vmatprep.mubr.f32.mxu0 0.0
    %411 = vmatmul.mubr.f32.gmra.mrb[0].mxu0 %v204
    %v412 = vpop.f32.mrb[0].mxu0
    %v413 = vadd.f32 0.0, %v412
    %v414 = vpop.f32.mrb[0].mxu0
    %415 = vmatprep.mubr.f32.mxu0 0.0
    %416 = vmatmul.mubr.f32.gmra.mrb[0].mxu0 %v207
    %v417 = vpop.f32.mrb[0].mxu0
    %v418 = vadd.f32 0.0, %v417
    %v419 = vpop.f32.mrb[0].mxu0
    %420 = vdwg.mxu0
    %v421 = vadd.f32 %v323, %v403
    %v422 = vadd.f32 %v324, %v408
    %v423 = vadd.f32 %v325, %v413
    %v424 = vadd.f32 %v326, %v418
    %s425 = scalar_lea.vmem [#allocation4], 128
    %v426 = vld [vmem:[%s425] sm:$0xff]
    %v427 = vld [vmem:[%s425 + $0x8] sm:$0xff]
    %v428 = vld [vmem:[%s425 + $0x10] sm:$0xff]
    %v429 = vld [vmem:[%s425 + $0x18] sm:$0xff]
    %v430 = vld [vmem:[%s425 + $0x20] sm:$0xff]
    %v431 = vld [vmem:[%s425 + $0x28] sm:$0xff]
    %v432 = vld [vmem:[%s425 + $0x30] sm:$0xff]
    %v433 = vld [vmem:[%s425 + $0x38] sm:$0xff]
    %434 = vmatprep.subr.mxu0 0.0
    %435 = vmatpush1.msra.mxu0 %v426
    %436 = vmatprep.subr.mxu0 0.0
    %437 = vmatpush1.msra.mxu0 %v427
    %438 = vmatprep.subr.mxu0 0.0
    %439 = vmatpush1.msra.mxu0 %v428
    %440 = vmatprep.subr.mxu0 0.0
    %441 = vmatpush1.msra.mxu0 %v429
    %442 = vmatprep.subr.mxu0 0.0
    %443 = vmatpush1.msra.mxu0 %v430
    %444 = vmatprep.subr.mxu0 0.0
    %445 = vmatpush1.msra.mxu0 %v431
    %446 = vmatprep.subr.mxu0 0.0
    %447 = vmatpush1.msra.mxu0 %v432
    %448 = vmatprep.subr.mxu0 0.0
    %449 = vmatpush1.msra.mxu0 %v433
    %450 = vmatprep.subr.mxu0 0.0
    %451 = vmatpush1.msra.mxu0 0.0
    %452 = vmatprep.subr.mxu0 0.0
    %453 = vmatpush1.msra.mxu0 0.0
    %454 = vmatprep.subr.mxu0 0.0
    %455 = vmatpush1.msra.mxu0 0.0
    %456 = vmatprep.subr.mxu0 0.0
    %457 = vmatpush1.msra.mxu0 0.0
    %458 = vmatprep.subr.mxu0 0.0
    %459 = vmatpush1.msra.mxu0 0.0
    %460 = vmatprep.subr.mxu0 0.0
    %461 = vmatpush1.msra.mxu0 0.0
    %462 = vmatprep.subr.mxu0 0.0
    %463 = vmatpush1.msra.mxu0 0.0
    %464 = vmatprep.subr.mxu0 0.0
    %465 = vmatpush1.msra.mxu0 0.0
    %466 = vmatprep.subr.mxu0 0.0
    %467 = vmatpush1.msra.mxu0 0.0
    %468 = vmatprep.subr.mxu0 0.0
    %469 = vmatpush1.msra.mxu0 0.0
    %470 = vmatprep.subr.mxu0 0.0
    %471 = vmatpush1.msra.mxu0 0.0
    %472 = vmatprep.subr.mxu0 0.0
    %473 = vmatpush1.msra.mxu0 0.0
    %474 = vmatprep.subr.mxu0 0.0
    %475 = vmatpush1.msra.mxu0 0.0
    %476 = vmatprep.subr.mxu0 0.0
    %477 = vmatpush1.msra.mxu0 0.0
    %478 = vmatprep.subr.mxu0 0.0
    %479 = vmatpush1.msra.mxu0 0.0
    %480 = vmatprep.subr.mxu0 0.0
    %481 = vmatpush1.msra.mxu0 0.0
    %482 = vmatprep.subr.mxu0 0.0
    %483 = vmatpush1.msra.mxu0 0.0
    %484 = vmatprep.subr.mxu0 0.0
    %485 = vmatpush1.msra.mxu0 0.0
    %486 = vmatprep.subr.mxu0 0.0
    %487 = vmatpush1.msra.mxu0 0.0
    %488 = vmatprep.subr.mxu0 0.0
    %489 = vmatpush1.msra.mxu0 0.0
    %490 = vmatprep.subr.mxu0 0.0
    %491 = vmatpush1.msra.mxu0 0.0
    %492 = vmatprep.subr.mxu0 0.0
    %493 = vmatpush1.msra.mxu0 0.0
    %494 = vmatprep.subr.mxu0 0.0
    %495 = vmatpush1.msra.mxu0 0.0
    %496 = vmatprep.subr.mxu0 0.0
    %497 = vmatpush1.msra.mxu0 0.0
    %498 = vmatprep.mubr.f32.mxu0 0.0
    %499 = vmatmul.mubr.f32.gmra.mrb[0].mxu0 %v198
    %v500 = vpop.f32.mrb[0].mxu0
    %v501 = vadd.f32 0.0, %v500
    %v502 = vpop.f32.mrb[0].mxu0
    %503 = vmatprep.mubr.f32.mxu0 0.0
    %504 = vmatmul.mubr.f32.gmra.mrb[0].mxu0 %v201
    %v505 = vpop.f32.mrb[0].mxu0
    %v506 = vadd.f32 0.0, %v505
    %v507 = vpop.f32.mrb[0].mxu0
    %508 = vmatprep.mubr.f32.mxu0 0.0
    %509 = vmatmul.mubr.f32.gmra.mrb[0].mxu0 %v204
    %v510 = vpop.f32.mrb[0].mxu0
    %v511 = vadd.f32 0.0, %v510
    %v512 = vpop.f32.mrb[0].mxu0
    %513 = vmatprep.mubr.f32.mxu0 0.0
    %514 = vmatmul.mubr.f32.gmra.mrb[0].mxu0 %v207
    %v515 = vpop.f32.mrb[0].mxu0
    %v516 = vadd.f32 0.0, %v515
    %v517 = vpop.f32.mrb[0].mxu0
    %518 = vdwg.mxu0
    %v519 = vrot.slane %v501, 1
    %v520 = vrot.slane %v506, 1
    %v521 = vrot.slane %v511, 1
    %v522 = vrot.slane %v516, 1
    %vm523 = vcmp.lt.s32.totalorder %v136, 7
    %v524 = vsel %vm523, %v521, %v522
    %v525 = vsel %vm523, %v520, %v521
    %v526 = vsel %vm523, %v519, %v520
    %v527 = vsel %vm523, %v522, %v519
    %v528 = vadd.s32 %v184, 1
    %v529 = vadd.s32 %v185, 1
    %v530 = vadd.s32 %v186, 1
    %v531 = vadd.s32 %v187, 1
    %vm532 = vcmp.ge.s32.totalorder %v528, 0
    %vm533 = vcmp.ge.s32.totalorder %v529, 0
    %vm534 = vcmp.ge.s32.totalorder %v530, 0
    %vm535 = vcmp.ge.s32.totalorder %v531, 0
    %vm536 = vcmp.lt.s32.totalorder %v528, 16
    %vm537 = vcmp.lt.s32.totalorder %v529, 16
    %vm538 = vcmp.lt.s32.totalorder %v530, 16
    %vm539 = vcmp.lt.s32.totalorder %v531, 16
    %vm540 = vmand %vm532, %vm536
    %vm541 = vmand %vm533, %vm537
    %vm542 = vmand %vm534, %vm538
    %vm543 = vmand %vm535, %vm539
    %v544 = vsel %vm540, %v526, 0.0
    %v545 = vsel %vm541, %v525, 0.0
    %v546 = vsel %vm542, %v524, 0.0
    %v547 = vsel %vm543, %v527, 0.0
    %v548 = vadd.f32 %v421, %v544
    %v549 = vadd.f32 %v422, %v545
    %v550 = vadd.f32 %v423, %v546
    %v551 = vadd.f32 %v424, %v547
    %552 = vst [vmem:[%s3] sm:$0xff] %v548
    %553 = vst [vmem:[%s3 + $0x8] sm:$0xff] %v549
    %554 = vst [vmem:[%s3 + $0x10] sm:$0xff] %v550
    %555 = vst [vmem:[%s3 + $0x18] sm:$0xff] %v551
    // Predicated region
    $region22: #{conv2d_pallas.1} parent=1 // pred_check
      _
    $region23: #{conv2d_pallas.1} parent=1 // pred_check_branch
      %557 = sbr.rel (0) target = $region25
    $region24: #{conv2d_pallas.1} parent=1 // pred_region
      _
    $region25: #{conv2d_pallas.1} parent=1 // pred_fallthru
      _
    // Predicated region
    $region26: #{conv2d_pallas.1} parent=1 // pred_check
      _
    $region27: #{conv2d_pallas.1} parent=1 // pred_check_branch
      %559 = sbr.rel (0) target = $region29
    $region28: #{conv2d_pallas.1} parent=1 // pred_region
      _
    $region29: #{conv2d_pallas.1} parent=1 // pred_fallthru
      _
    %560 = vsyncpa [#allocation3], 1
    %561 = vsyncpa [#allocation5], 1

</llo_original>
